<compile_context>
chip_gen: v6e
topology: v6e:2x2x1
jax: 0.10.0
libtpu: 0.0.40
codegen_flags: <defaults>
</compile_context>

<pallas_src>
import functools

import jax
import jax.numpy as jnp
from jax.experimental import pallas as pl
from jax.experimental.pallas import tpu as pltpu

PACK = 128  # lane-dense packed width for the small (2-wide / 5-wide) outputs


# ---------------------------------------------------------------------------
# Kernel
# ---------------------------------------------------------------------------
def multitask_kernel(share_ref, pri_ref,
                     w_cat_ref, b_proj_ref, w_lin_ref, b_lin_ref,
                     feat_ref, proj_ref, cat_ref,
                     max_ref):
    """One (batch-block i, seq-block j) grid step.

    share_ref / pri_ref : (tb, ts, H)     encoder activation tiles
    w_cat_ref           : (2H, PACK)      stacked [w_sh.T | 0; 0 | w_pr.T] weight
    b_proj_ref          : (1, PACK)       packed biases (share @ 0:5, pri @ 5:10)
    w_lin_ref           : (H, PACK)       Linear(H,2) weight, lane-padded (cols 0:2)
    b_lin_ref           : (1, PACK)
    feat_ref            : (tb, PACK)      share_feature (written on last seq block)
    proj_ref            : (tb, ts, PACK)  packed share/pri projections
    cat_ref             : (tb, ts, 2H)    enc_src = concat
    max_ref             : (tb, H)         running max over seq (VMEM scratch)
    """
    j = pl.program_id(1)
    n_seq = pl.num_programs(1)

    sh = share_ref[...]
    pr = pri_ref[...]
    tb, ts, H = sh.shape

    # enc_src = torch.cat([share, pri], dim=2): two direct lane-slice stores
    # (no materialized concatenate value).  For BERT H % 128 == 0 these are
    # lane-aligned unmasked vst.
    cat_ref[:, :, 0:H] = sh.astype(cat_ref.dtype)
    cat_ref[:, :, H:2 * H] = pr.astype(cat_ref.dtype)

    # share_linear + pri_linear fused into one stacked matmul on the concat
    # tile read back from VMEM: [tokens, 2H] x [2H, 128] -> packed slab.
    x = cat_ref[...].reshape(tb * ts, 2 * H)
    packed = (jnp.dot(x, w_cat_ref[...], preferred_element_type=jnp.float32)
              + b_proj_ref[...])
    proj_ref[...] = packed.reshape(tb, ts, PACK).astype(proj_ref.dtype)

    # get_share_feature: cross-seq-block running max accumulator.
    # Relies on the seq axis being the innermost, sequential ("arbitrary")
    # grid axis and on the feat output block index not depending on j.
    @pl.when(j == 0)
    def _():
        max_ref[...] = jnp.full(max_ref.shape, -jnp.inf, dtype=max_ref.dtype)

    max_ref[...] = jnp.maximum(max_ref[...], jnp.max(sh, axis=1))

    # Tiny Linear(H, 2) done once, on the final seq block (lane-padded output).
    @pl.when(j == n_seq - 1)
    def _():
        feat_ref[...] = (
            jnp.dot(max_ref[...], w_lin_ref[...],
                    preferred_element_type=jnp.float32)
            + b_lin_ref[...]
        ).astype(feat_ref.dtype)


# ---------------------------------------------------------------------------
# Tile / VMEM sizing helpers
# ---------------------------------------------------------------------------
def _default_vmem_limit_bytes():
    """~75% of physical VMEM (per TC), capped; conservative fallback 64 MiB."""
    cap = 64 * 1024 * 1024
    try:
        cap = int(pltpu.get_tpu_info().vmem_capacity_bytes)
    except Exception:
        pass
    return min(int(cap * 0.75), 110 * 1024 * 1024)


def _vmem_per_step_bytes(tb, ts, H, in_bytes, out_bytes):
    toks = tb * ts
    per_step = (toks * 2 * H * in_bytes        # share + pri input tiles
                + toks * 2 * H * out_bytes     # enc_src (concat) output tile
                + toks * PACK * out_bytes)     # packed projection output tile
    return 2 * per_step                        # BlockSpec double-buffering


def _seq_tile_candidates(S):
    cands = [t for t in (1024, 512, 256, 128, 64, 32, 16, 8) if t < S and S % t == 0]
    return cands + [S]


def _batch_tile_candidates(B):
    # Multiples of 8 keep the (tb, PACK) feature block sublane-aligned;
    # tb == B is always legal (full-extent block).
    return [b for b in range(1, B + 1) if B % b == 0 and (b % 8 == 0 or b == B)]


def _choose_tiles(B, S, H, *, in_bytes, out_bytes, vmem_limit_bytes,
                  tb=None, ts=None):
    """Pick (tb, ts): fit ~65% of the VMEM limit, prefer >=2 batch blocks
    (v7x megacore sharding), then the largest token count (HBM roofline)."""
    budget = int(0.65 * vmem_limit_bytes)
    tb_cands = [tb] if tb is not None else _batch_tile_candidates(B)
    ts_cands = [ts] if ts is not None else _seq_tile_candidates(S)

    best = None
    for b in tb_cands:
        for t in ts_cands:
            fits = _vmem_per_step_bytes(b, t, H, in_bytes, out_bytes) <= budget
            toks = b * t
            score = (0 if fits else 1,
                     0 if B // b >= 2 else 1,
                     -toks if fits else toks,
                     -t)
            if best is None or score < best[0]:
                best = (score, b, t)
    return best[1], best[2]


# ---------------------------------------------------------------------------
# Forward wrapper
# ---------------------------------------------------------------------------
@functools.partial(jax.jit,
                   static_argnames=("ts", "tb", "out_dtype", "vmem_limit_bytes"))
def multitask_forward(share_enc, pri_enc, packed_params, *,
                      ts=None, tb=None, out_dtype=jnp.float32,
                      vmem_limit_bytes=None):
    """MultiTask-owned compute as one tiled Pallas kernel.

    share_enc, pri_enc : [B, S, H] (outputs of the injected share / private encoders)
    Returns PACKED outputs (slice lazily at the consumer via unpack_outputs):
      feat_pad [B, 128] f32   (share_feature in cols 0:2)
      proj_pad [B, S, 128]    (share_out in cols 0:5, pri_out in cols 5:10)
      enc_src  [B, S, 2H]     (concat)
    """
    B, S, H = share_enc.shape
    in_bytes = jnp.dtype(share_enc.dtype).itemsize
    out_bytes = jnp.dtype(out_dtype).itemsize

    if vmem_limit_bytes is None:
        vmem_limit_bytes = _default_vmem_limit_bytes()
    tb, ts = _choose_tiles(B, S, H, in_bytes=in_bytes, out_bytes=out_bytes,
                           vmem_limit_bytes=vmem_limit_bytes, tb=tb, ts=ts)

    assert S % ts == 0, "seq length must be divisible by the seq tile"
    assert B % tb == 0, "batch must be divisible by the batch tile"
    assert ts == S or ts % 8 == 0, "seq tile must be sublane-aligned"
    # NOTE: BERT H in {768, 1024} keeps the concat slice stores lane-aligned
    # (H % 128 == 0) -> unmasked vst; other H is still correct, just slower.

    w_cat = packed_params['w_cat']      # (2H, PACK)
    b_proj = packed_params['b_proj']    # (1, PACK)
    w_lin = packed_params['w_lin']      # (H, PACK)
    b_lin = packed_params['b_lin']      # (1, PACK)

    grid = (B // tb, S // ts)

    out_shapes = (
        jax.ShapeDtypeStruct((B, PACK), jnp.float32),      # share_feature (padded)
        jax.ShapeDtypeStruct((B, S, PACK), out_dtype),     # packed projections
        jax.ShapeDtypeStruct((B, S, 2 * H), out_dtype),    # enc_src = concat
    )

    grid_spec = pltpu.PrefetchScalarGridSpec(
        num_scalar_prefetch=0,
        grid=grid,
        in_specs=[
            pl.BlockSpec((tb, ts, H), lambda i, j: (i, j, 0)),    # share
            pl.BlockSpec((tb, ts, H), lambda i, j: (i, j, 0)),    # pri
            pl.BlockSpec((2 * H, PACK), lambda i, j: (0, 0)),     # w_cat (resident)
            pl.BlockSpec((1, PACK), lambda i, j: (0, 0)),         # b_proj
            pl.BlockSpec((H, PACK), lambda i, j: (0, 0)),         # w_lin
            pl.BlockSpec((1, PACK), lambda i, j: (0, 0)),         # b_lin
        ],
        out_specs=[
            pl.BlockSpec((tb, PACK), lambda i, j: (i, 0)),          # feat (acc-style)
            pl.BlockSpec((tb, ts, PACK), lambda i, j: (i, j, 0)),   # packed proj
            pl.BlockSpec((tb, ts, 2 * H), lambda i, j: (i, j, 0)),  # enc_src
        ],
        scratch_shapes=[pltpu.VMEM((tb, H), jnp.float32)],          # running max
    )
    # (Optional extra headroom on v7x: pipeline_mode=pl.Buffered(1) on the
    #  constant-index weight specs, pl.Buffered(3) on activations for v5e/v6e.)

    weight_bytes = (3 * H + 2) * PACK * 4
    cost = pl.CostEstimate(
        flops=2 * B * S * 2 * H * PACK + 2 * B * H * PACK,
        transcendentals=0,
        bytes_accessed=(B * S * 2 * H * in_bytes
                        + (B * S * (2 * H + PACK) + B * PACK) * out_bytes
                        + weight_bytes),
    )

    feat_pad, proj_pad, enc_src = pl.pallas_call(
        multitask_kernel,
        out_shape=out_shapes,
        grid_spec=grid_spec,
        compiler_params=pltpu.CompilerParams(
            dimension_semantics=("parallel", "arbitrary"),
            vmem_limit_bytes=int(vmem_limit_bytes)),
        cost_estimate=cost,
    )(share_enc, pri_enc, w_cat, b_proj, w_lin, b_lin)

    return feat_pad, proj_pad, enc_src


def unpack_outputs(feat_pad, proj_pad):
    """Consumer-side unpacking of the packed kernel outputs.

    Kept out of the kernel wrapper so the [B,S,128] slab is not eagerly
    re-read by extra XLA slice passes; in production fuse these slices into
    the downstream decoder / classification consumers instead.
    """
    share_feature = feat_pad[:, 0:2]
    share_out = proj_pad[:, :, 0:5]
    pri_out = proj_pad[:, :, 5:10]
    return share_feature, share_out, pri_out


# ---------------------------------------------------------------------------
# Parameters
# ---------------------------------------------------------------------------
def init_params(key, hid_dim):
    """Deterministic init matching the shapes of MultiTask.__init__."""
    ks = jax.random.split(key, 6)

    def lin(kw, kb, out_dim, b_shape):
        w = 0.02 * jax.random.normal(kw, (out_dim, hid_dim), jnp.float32)
        b = 0.02 * jax.random.normal(kb, b_shape, jnp.float32)
        return w, b

    return {
        'linear':       lin(ks[0], ks[1], 2, (1, 2)),
        'share_linear': lin(ks[2], ks[3], 5, (1, 1, 5)),
        'pri_linear':   lin(ks[4], ks[5], 5, (1, 1, 5)),
    }


def pack_params(params):
    """Pre-transpose / lane-pad / stack the tiny weights ONCE, outside the kernel."""
    w_lin, b_lin = params['linear']        # (2, H), (1, 2)
    w_sh, b_sh = params['share_linear']    # (5, H), (1, 1, 5)
    w_pr, b_pr = params['pri_linear']      # (5, H), (1, 1, 5)
    H = w_lin.shape[1]

    # Stacked weight for the fused [tokens, 2H] x [2H, 128] projection matmul:
    # rows 0:H feed cols 0:5 (share_linear), rows H:2H feed cols 5:10 (pri_linear).
    w_cat = (jnp.zeros((2 * H, PACK), jnp.float32)
             .at[0:H, 0:5].set(w_sh.T)
             .at[H:2 * H, 5:10].set(w_pr.T))
    b_proj = (jnp.zeros((1, PACK), jnp.float32)
              .at[0, 0:5].set(b_sh.reshape(5))
              .at[0, 5:10].set(b_pr.reshape(5)))
    w_lin_pad = jnp.zeros((H, PACK), jnp.float32).at[:, 0:2].set(w_lin.T)
    b_lin_pad = jnp.zeros((1, PACK), jnp.float32).at[0, 0:2].set(b_lin.reshape(2))
    return dict(w_cat=w_cat, b_proj=b_proj, w_lin=w_lin_pad, b_lin=b_lin_pad)


def reference_forward(share_enc, pri_enc, params):
    """Pure-JAX reference mirroring the PyTorch module."""
    w_lin, b_lin = params['linear']
    w_sh, b_sh = params['share_linear']
    w_pr, b_pr = params['pri_linear']
    feat = jnp.max(share_enc, axis=1) @ w_lin.T + b_lin
    share_out = jnp.einsum('bsh,kh->bsk', share_enc, w_sh) + b_sh
    pri_out = jnp.einsum('bsh,kh->bsk', pri_enc, w_pr) + b_pr
    enc_src = jnp.concatenate([share_enc, pri_enc], axis=-1)
    return feat, share_out, pri_out, enc_src


# ---------------------------------------------------------------------------
# Self-test
# ---------------------------------------------------------------------------
if __name__ == "__main__":
    # Small shapes; seq=16 with ts=8 forces 2 seq blocks so the cross-block
    # running-max (feature accumulator) path is actually exercised.
    B, S, H = 2, 16, 32

    key = jax.random.PRNGKey(0)
    k_share, k_pri, k_param, k_mask = jax.random.split(key, 4)

    # TODO(synk): share_encoder / norm_encoder / class_encoder are injected BERT
    # encoders with no definition here; their outputs are synthesized inputs.
    share_enc = jax.random.normal(k_share, (B, S, H), jnp.float32)
    pri_enc = jax.random.normal(k_pri, (B, S, H), jnp.float32)

    # src_mask = attention_mask.unsqueeze(1).unsqueeze(2) -> [B,1,1,S] (glue, plain JAX)
    attention_mask = (jax.random.uniform(k_mask, (B, S)) > 0.1).astype(jnp.float32)
    src_mask = attention_mask[:, None, None, :]
    # TODO(synk): decoder(labels, enc_src, src_mask) and classification(enc_src)
    # are external injected modules; not implemented here.

    params = init_params(k_param, H)
    packed_params = pack_params(params)

    # --- f32 run: exact semantics check against the pure-JAX reference ---
    feat_pad, proj_pad, enc_src = jax.block_until_ready(
        multitask_forward(share_enc, pri_enc, packed_params, ts=8))
    share_feature, share_out, pri_out = unpack_outputs(feat_pad, proj_pad)

    f_ref, s_ref, p_ref, e_ref = reference_forward(share_enc, pri_enc, params)
    assert share_feature.shape == f_ref.shape and share_out.shape == s_ref.shape
    assert pri_out.shape == p_ref.shape and enc_src.shape == e_ref.shape
    assert jnp.allclose(share_feature, f_ref, atol=1e-5, rtol=1e-5)
    assert jnp.allclose(share_out, s_ref, atol=1e-5, rtol=1e-5)
    assert jnp.allclose(pri_out, p_ref, atol=1e-5, rtol=1e-5)
    assert jnp.allclose(enc_src, e_ref, atol=1e-5, rtol=1e-5)

    # --- bf16 output path (bandwidth compression option) — loose tolerance ---
    feat_bf, proj_bf, enc_bf = jax.block_until_ready(
        multitask_forward(share_enc, pri_enc, packed_params, ts=8,
                          out_dtype=jnp.bfloat16))
    assert enc_bf.dtype == jnp.bfloat16 and proj_bf.dtype == jnp.bfloat16
    assert jnp.allclose(enc_bf.astype(jnp.float32), e_ref, atol=3e-2, rtol=3e-2)
    sh_bf, so_bf, po_bf = unpack_outputs(feat_bf, proj_bf)
    assert jnp.allclose(so_bf.astype(jnp.float32), s_ref, atol=3e-2, rtol=3e-2)
    assert jnp.allclose(po_bf.astype(jnp.float32), p_ref, atol=3e-2, rtol=3e-2)
    assert jnp.allclose(sh_bf, f_ref, atol=1e-4, rtol=1e-4)

    print("KERNEL_OK")
</pallas_src>

<mosaic_0001>
module attributes {stable_mosaic.version = 11 : i64} {
  func.func @multitask_kernel(%arg0: i32, %arg1: i32, %arg2: memref<2x8x32xf32, #tpu.memory_space<vmem>>, %arg3: memref<2x8x32xf32, #tpu.memory_space<vmem>>, %arg4: memref<64x128xf32, #tpu.memory_space<vmem>>, %arg5: memref<1x128xf32, #tpu.memory_space<vmem>>, %arg6: memref<32x128xf32, #tpu.memory_space<vmem>>, %arg7: memref<1x128xf32, #tpu.memory_space<vmem>>, %arg8: memref<2x128xf32, #tpu.memory_space<vmem>>, %arg9: memref<2x8x128xf32, #tpu.memory_space<vmem>>, %arg10: memref<2x8x64xf32, #tpu.memory_space<vmem>>, %arg11: memref<2x32xf32, #tpu.memory_space<vmem>>) attributes {dimension_semantics = [#tpu.dimension_semantics<parallel>, #tpu.dimension_semantics<arbitrary>], iteration_bounds = array<i64: 1, 2>, scalar_prefetch = 0 : i64, scratch_operands = 1 : i64, tpu.core_type = #tpu.core_type<tc>, window_params = [{transform_indices = @transform_0, window_bounds = array<i64: 2, 8, 32>}, {transform_indices = @transform_1, window_bounds = array<i64: 2, 8, 32>}, {pipeline_mode = #tpu.pipeline_mode<synchronous>, transform_indices = @transform_2, window_bounds = array<i64: 64, 128>}, {pipeline_mode = #tpu.pipeline_mode<synchronous>, transform_indices = @transform_3, window_bounds = array<i64: 1, 128>}, {pipeline_mode = #tpu.pipeline_mode<synchronous>, transform_indices = @transform_4, window_bounds = array<i64: 32, 128>}, {pipeline_mode = #tpu.pipeline_mode<synchronous>, transform_indices = @transform_5, window_bounds = array<i64: 1, 128>}, {transform_indices = @transform_6, window_bounds = array<i64: 2, 128>}, {transform_indices = @transform_7, window_bounds = array<i64: 2, 8, 128>}, {transform_indices = @transform_8, window_bounds = array<i64: 2, 8, 64>}]} {
    %c0 = arith.constant 0 : index
    %c0_0 = arith.constant 0 : index
    %c0_1 = arith.constant 0 : index
    %0 = vector.load %arg2[%c0, %c0_0, %c0_1] : memref<2x8x32xf32, #tpu.memory_space<vmem>>, vector<2x8x32xf32>
    %c0_2 = arith.constant 0 : index
    %c0_3 = arith.constant 0 : index
    %c0_4 = arith.constant 0 : index
    %1 = vector.load %arg3[%c0_2, %c0_3, %c0_4] : memref<2x8x32xf32, #tpu.memory_space<vmem>>, vector<2x8x32xf32>
    %c0_5 = arith.constant 0 : index
    %c0_6 = arith.constant 0 : index
    %c0_7 = arith.constant 0 : index
    %2 = vector.load %arg10[%c0_5, %c0_6, %c0_7] : memref<2x8x64xf32, #tpu.memory_space<vmem>>, vector<2x8x32xf32>
    tpu.vector_store %arg10[%c0_5, %c0_6, %c0_7], %0 {strides = array<i32>} : memref<2x8x64xf32, #tpu.memory_space<vmem>>, vector<2x8x32xf32>,
    %c0_8 = arith.constant 0 : index
    %c0_9 = arith.constant 0 : index
    %c32 = arith.constant 32 : index
    %3 = vector.load %arg10[%c0_8, %c0_9, %c32] : memref<2x8x64xf32, #tpu.memory_space<vmem>>, vector<2x8x32xf32>
    tpu.vector_store %arg10[%c0_8, %c0_9, %c32], %1 {strides = array<i32>} : memref<2x8x64xf32, #tpu.memory_space<vmem>>, vector<2x8x32xf32>,
    %c0_10 = arith.constant 0 : index
    %c0_11 = arith.constant 0 : index
    %c0_12 = arith.constant 0 : index
    %4 = vector.load %arg10[%c0_10, %c0_11, %c0_12] : memref<2x8x64xf32, #tpu.memory_space<vmem>>, vector<2x8x64xf32>
    %5 = vector.shape_cast %4 : vector<2x8x64xf32> to vector<16x64xf32>
    %c0_13 = arith.constant 0 : index
    %c0_14 = arith.constant 0 : index
    %6 = vector.load %arg4[%c0_13, %c0_14] : memref<64x128xf32, #tpu.memory_space<vmem>>, vector<64x128xf32>
    %cst = arith.constant dense<0.000000e+00> : vector<16x128xf32>
    %7 = tpu.matmul %5, %6, %cst {dimension_numbers = #tpu.dot_dimension_numbers<[1], [0], [0], [1], [0, 0, 1, 1], [], []>} : vector<16x64xf32>, vector<64x128xf32>, vector<16x128xf32> -> vector<16x128xf32>
    %c0_15 = arith.constant 0 : index
    %c0_16 = arith.constant 0 : index
    %8 = vector.load %arg5[%c0_15, %c0_16] : memref<1x128xf32, #tpu.memory_space<vmem>>, vector<1x128xf32>
    %9 = vector.broadcast %8 : vector<1x128xf32> to vector<16x128xf32>
    %10 = arith.addf %7, %9 : vector<16x128xf32>
    %11 = vector.shape_cast %10 : vector<16x128xf32> to vector<2x8x128xf32>
    %c0_17 = arith.constant 0 : index
    %c0_18 = arith.constant 0 : index
    %c0_19 = arith.constant 0 : index
    %12 = vector.load %arg9[%c0_17, %c0_18, %c0_19] : memref<2x8x128xf32, #tpu.memory_space<vmem>>, vector<2x8x128xf32>
    tpu.vector_store %arg9[%c0_17, %c0_18, %c0_19], %11 {strides = array<i32>} : memref<2x8x128xf32, #tpu.memory_space<vmem>>, vector<2x8x128xf32>,
    %c0_i32 = arith.constant 0 : i32
    %13 = arith.cmpi eq, %arg1, %c0_i32 : i32
    %14 = arith.extui %13 : i1 to i32
    %c0_i32_20 = arith.constant 0 : i32
    %15 = arith.cmpi ne, %14, %c0_i32_20 : i32
    scf.if %15 {
      %cst_27 = arith.constant 0xFF800000 : f32
      %23 = vector.broadcast %cst_27 : f32 to vector<2x32xf32>
      %c0_28 = arith.constant 0 : index
      %c0_29 = arith.constant 0 : index
      %24 = vector.load %arg11[%c0_28, %c0_29] : memref<2x32xf32, #tpu.memory_space<vmem>>, vector<2x32xf32>
      tpu.vector_store %arg11[%c0_28, %c0_29], %23 {strides = array<i32>} : memref<2x32xf32, #tpu.memory_space<vmem>>, vector<2x32xf32>,
    } else {
    }
    %c0_21 = arith.constant 0 : index
    %c0_22 = arith.constant 0 : index
    %16 = vector.load %arg11[%c0_21, %c0_22] : memref<2x32xf32, #tpu.memory_space<vmem>>, vector<2x32xf32>
    %cst_23 = arith.constant dense<0xFF800000> : vector<2x32xf32>
    %17 = vector.multi_reduction <maximumf>, %0, %cst_23 [1] : vector<2x8x32xf32> to vector<2x32xf32>
    %18 = arith.maximumf %16, %17 : vector<2x32xf32>
    %c0_24 = arith.constant 0 : index
    %c0_25 = arith.constant 0 : index
    %19 = vector.load %arg11[%c0_24, %c0_25] : memref<2x32xf32, #tpu.memory_space<vmem>>, vector<2x32xf32>
    tpu.vector_store %arg11[%c0_24, %c0_25], %18 {strides = array<i32>} : memref<2x32xf32, #tpu.memory_space<vmem>>, vector<2x32xf32>,
    %c1_i32 = arith.constant 1 : i32
    %20 = arith.cmpi eq, %arg1, %c1_i32 : i32
    %21 = arith.extui %20 : i1 to i32
    %c0_i32_26 = arith.constant 0 : i32
    %22 = arith.cmpi ne, %21, %c0_i32_26 : i32
    scf.if %22 {
      %c0_27 = arith.constant 0 : index
      %c0_28 = arith.constant 0 : index
      %23 = vector.load %arg11[%c0_27, %c0_28] : memref<2x32xf32, #tpu.memory_space<vmem>>, vector<2x32xf32>
      %c0_29 = arith.constant 0 : index
      %c0_30 = arith.constant 0 : index
      %24 = vector.load %arg6[%c0_29, %c0_30] : memref<32x128xf32, #tpu.memory_space<vmem>>, vector<32x128xf32>
      %cst_31 = arith.constant dense<0.000000e+00> : vector<2x128xf32>
      %25 = tpu.matmul %23, %24, %cst_31 {dimension_numbers = #tpu.dot_dimension_numbers<[1], [0], [0], [1], [0, 0, 1, 1], [], []>} : vector<2x32xf32>, vector<32x128xf32>, vector<2x128xf32> -> vector<2x128xf32>
      %c0_32 = arith.constant 0 : index
      %c0_33 = arith.constant 0 : index
      %26 = vector.load %arg7[%c0_32, %c0_33] : memref<1x128xf32, #tpu.memory_space<vmem>>, vector<1x128xf32>
      %27 = vector.broadcast %26 : vector<1x128xf32> to vector<2x128xf32>
      %28 = arith.addf %25, %27 : vector<2x128xf32>
      %c0_34 = arith.constant 0 : index
      %c0_35 = arith.constant 0 : index
      %29 = vector.load %arg8[%c0_34, %c0_35] : memref<2x128xf32, #tpu.memory_space<vmem>>, vector<2x128xf32>
      tpu.vector_store %arg8[%c0_34, %c0_35], %28 {strides = array<i32>} : memref<2x128xf32, #tpu.memory_space<vmem>>, vector<2x128xf32>,
    } else {
    }
    return
  }
  func.func @transform_0(%arg0: i32, %arg1: i32) -> (i32, i32, i32) {
    %c0_i32 = arith.constant 0 : i32
    %c0_i32_0 = arith.constant 0 : i32
    return %arg0, %arg1, %c0_i32 : i32, i32, i32
  }
  func.func @transform_1(%arg0: i32, %arg1: i32) -> (i32, i32, i32) {
    %c0_i32 = arith.constant 0 : i32
    %c0_i32_0 = arith.constant 0 : i32
    return %arg0, %arg1, %c0_i32 : i32, i32, i32
  }
  func.func @transform_2(%arg0: i32, %arg1: i32) -> (i32, i32) {
    %c0_i32 = arith.constant 0 : i32
    %c0_i32_0 = arith.constant 0 : i32
    %c0_i32_1 = arith.constant 0 : i32
    return %c0_i32, %c0_i32_0 : i32, i32
  }
  func.func @transform_3(%arg0: i32, %arg1: i32) -> (i32, i32) {
    %c0_i32 = arith.constant 0 : i32
    %c0_i32_0 = arith.constant 0 : i32
    %c0_i32_1 = arith.constant 0 : i32
    return %c0_i32, %c0_i32_0 : i32, i32
  }
  func.func @transform_4(%arg0: i32, %arg1: i32) -> (i32, i32) {
    %c0_i32 = arith.constant 0 : i32
    %c0_i32_0 = arith.constant 0 : i32
    %c0_i32_1 = arith.constant 0 : i32
    return %c0_i32, %c0_i32_0 : i32, i32
  }
  func.func @transform_5(%arg0: i32, %arg1: i32) -> (i32, i32) {
    %c0_i32 = arith.constant 0 : i32
    %c0_i32_0 = arith.constant 0 : i32
    %c0_i32_1 = arith.constant 0 : i32
    return %c0_i32, %c0_i32_0 : i32, i32
  }
  func.func @transform_6(%arg0: i32, %arg1: i32) -> (i32, i32) {
    %c0_i32 = arith.constant 0 : i32
    %c0_i32_0 = arith.constant 0 : i32
    return %arg0, %c0_i32 : i32, i32
  }
  func.func @transform_7(%arg0: i32, %arg1: i32) -> (i32, i32, i32) {
    %c0_i32 = arith.constant 0 : i32
    %c0_i32_0 = arith.constant 0 : i32
    return %arg0, %arg1, %c0_i32 : i32, i32, i32
  }
  func.func @transform_8(%arg0: i32, %arg1: i32) -> (i32, i32, i32) {
    %c0_i32 = arith.constant 0 : i32
    %c0_i32_0 = arith.constant 0 : i32
    return %arg0, %arg1, %c0_i32 : i32, i32, i32
  }
}

</mosaic_0001>

<llo_original>
// kernel: multitask_forward.1
$region0: #{multitask_forward.1}
  #allocation0 [shape = 'u32[]', space=smem, size = 0x4, offset = 0x4, fixed_abs, tag = 'smem constant byte address 0x4 - core index']
  #allocation1 [shape = 'u32[144,128]{1,0:T(1,128)}', space=vmem, size = 0x12000, scoped, tag = 'internal scratch']
  #allocation2 [shape = 'f32[2,32]{1,0:T(2,128)}', space=vmem, size = 0x400, scoped, tag = 'scratch operand']
  %s0 = inlined_call_operand.hbm [shape: f32[2,16,32], index: 0, kind: input, shape index: {}]
  %s1 = inlined_call_operand.hbm [shape: f32[2,16,32], index: 1, kind: input, shape index: {}]
  %s2 = inlined_call_operand.hbm [shape: f32[64,128], index: 2, kind: input, shape index: {}]
  %s3 = inlined_call_operand.vmem [shape: f32[1,128], index: 3, kind: input, shape index: {}]
  %s4 = inlined_call_operand.hbm [shape: f32[32,128], index: 4, kind: input, shape index: {}]
  %s5 = inlined_call_operand.vmem [shape: f32[1,128], index: 5, kind: input, shape index: {}]
  %s6 = inlined_call_operand.hbm [shape: f32[2,128], index: 6, kind: output, shape index: {0}]
  %s7 = inlined_call_operand.hbm [shape: f32[2,16,128], index: 7, kind: output, shape index: {1}]
  %s8 = inlined_call_operand.hbm [shape: f32[2,16,64], index: 8, kind: output, shape index: {2}]
  %9 = xla_tuple %s6, %s7, %s8
  %s10 = sld [smem:[#allocation0]]
  $region97: #{multitask_forward.1} parent=0
    _
  %s12 = ssub.s32 1, %s10
  %s13 = scalar_select 0, %s12, %s10
  $region1: #{multitask_forward.1} parent=0
    #allocation3 [shape = 'u8[16384]{0}', space=vmem, size = 0x4000, scoped, tag = 'input window, operand 0']
    #allocation4 [shape = 's32[2]{0}', space=sflag, size = 0x8, scoped, tag = 'scoped memory for multitask_forward.1']
    #allocation5 [shape = 's32[2]{0}', space=sflag, size = 0x8, scoped, tag = 'scoped memory for multitask_forward.1']
    #allocation6 [shape = 'u8[16384]{0}', space=vmem, size = 0x4000, scoped, tag = 'input window, operand 1']
    #allocation7 [shape = 's32[2]{0}', space=sflag, size = 0x8, scoped, tag = 'scoped memory for multitask_forward.1']
    #allocation8 [shape = 'u8[32768]{0}', space=vmem, size = 0x8000, scoped, tag = 'input window, operand 2, single buffered']
    #allocation9 [shape = 'u8[16384]{0}', space=vmem, size = 0x4000, scoped, tag = 'input window, operand 4, single buffered']
    #allocation10 [shape = 's32[1]{0}', space=sflag, size = 0x4, scoped, tag = 'scoped memory for multitask_forward.1']
    #allocation11 [shape = 'u8[1024]{0}', space=vmem, size = 0x400, scoped, tag = 'output window, operand 0, single buffered']
    #allocation12 [shape = 'u8[16384]{0}', space=vmem, size = 0x4000, scoped, tag = 'output window, operand 1']
    #allocation13 [shape = 's32[2]{0}', space=sflag, size = 0x8, scoped, tag = 'scoped memory for multitask_forward.1']
    #allocation14 [shape = 'u8[16384]{0}', space=vmem, size = 0x4000, scoped, tag = 'output window, operand 2']
    %14 = vsyncpa [#allocation4], 0
    %s15 = scalar_lea.sflag [#allocation4], 1
    %16 = vsyncpa %s15, 0
    %17 = vsyncpa [#allocation7], 0
    %s18 = scalar_lea.sflag [#allocation7], 1
    %19 = vsyncpa %s18, 0
    %20 = vsyncpa [#allocation10], 0
    %21 = vsyncpa [#allocation5], 0
    %22 = vsyncpa [#allocation13], 0
    %s23 = scalar_lea.sflag [#allocation13], 1
    %24 = vsyncpa %s23, 0
    loop: start=0, step=1, limit=4
    $region2: #{multitask_forward.1} parent=1 // loop_pre_header
      _
    $region3: #{multitask_forward.1} parent=1 // loop_header
      %s26 = sphi 0, %s30
      %p27 = scmp.ge.s32.totalorder %s26, 4
      %s33 = sphi 0, %s45
      %s34 = sphi 0, %s41
      %s35 = sphi 0, %s33
      %s36 = sphi 0, %s34
      %s37 = sphi 0, %s35
      %s38 = sphi 0, %s36
      %s50 = sphi 0, %s52
      %s53 = sphi 0, %s50
      %s54 = sphi 0, %s53
      %s70 = sphi 0, %s54
      %s78 = sphi 0, %s80
      %s81 = sphi 0, %s78
      %s82 = sphi 0, %s81
      %s98 = sphi 0, %s82
      %s102 = sphi 0, %s102
      %s104 = sphi 0, %s102
      %s105 = sphi 0, %s104
      %s119 = sphi 0, %s105
      %s123 = sphi 0, %s123
      %s125 = sphi 0, %s123
      %s126 = sphi 0, %s125
      %s140 = sphi 0, %s126
      %s144 = sphi 0, %s144
      %s146 = sphi 0, %s144
      %s147 = sphi 0, %s146
      %s161 = sphi 0, %s147
      %s165 = sphi 0, %s165
      %s167 = sphi 0, %s165
      %s168 = sphi 0, %s167
      %s182 = sphi 0, %s168
      %s188 = sphi 0, %s190
      %s191 = sphi 0, %s188
      %s192 = sphi 0, %s191
      %s208 = sphi 0, %s192
      %s216 = sphi 0, %s218
      %s219 = sphi 0, %s216
      %s220 = sphi 0, %s219
      %s236 = sphi 0, %s220
      %s244 = sphi 0, %s246
      %s247 = sphi 0, %s244
      %s248 = sphi 0, %s247
      %s264 = sphi 0, %s248
    $region4: #{multitask_forward.1} parent=1 // loop_header_branch
      %29 = sbr.rel (%p27) target = $region8
    $region5: #{multitask_forward.1} parent=1 // loop_body
      %s31 = ssub.s32 %s26, 1
      %s32 = ssub.s32 %s26, 2
      %s39 = sadd.s32 1, %s34
      %p40 = scmp.ge.s32.totalorder %s39, 2
      %s41 = scalar_select %p40, 0, %s39
      %s42 = sadd.s32 1, %s33
      %s43 = scalar_select %p40, %s42, %s33
      %p44 = scmp.ge.s32.totalorder %s43, 1
      %s45 = scalar_select %p44, 0, %s43
      %s46 = ssub.s32 %s33, %s45
      %s47 = ssub.s32 %s34, %s41
      %s48 = sor.u32 %s46, %s47
      %p49 = scmp.eq.s32.totalorder %s48, 0
      %s51 = sadd.s32 %s50, 1
      %s52 = scalar_select %p49, %s50, %s51
      %p55 = pneg %p49
      %p56 = scmp.eq.s32.totalorder %s26, 1
      %p57 = por %p55, %p56
      %p58 = scmp.ne.s32.totalorder %s50, %s53
      %p59 = scmp.eq.s32.totalorder %s26, 0
      %p60 = por %p58, %p59
      %p61 = scmp.ne.s32.totalorder %s50, %s53
      %p62 = scmp.eq.s32.totalorder %s31, 1
      %p63 = por %p61, %p62
      %p64 = scmp.ne.s32.totalorder %s53, %s54
      %p65 = scmp.eq.s32.totalorder %s31, 0
      %p66 = por %p64, %p65
      %p67 = scmp.ne.s32.totalorder %s53, %s54
      %p68 = scmp.eq.s32.totalorder %s32, 1
      %p69 = por %p67, %p68
      %p71 = scmp.ne.s32.totalorder %s54, %s70
      %p72 = scmp.eq.s32.totalorder %s32, 0
      %p73 = por %p71, %p72
      %s74 = ssub.s32 %s33, %s45
      %s75 = ssub.s32 %s34, %s41
      %s76 = sor.u32 %s74, %s75
      %p77 = scmp.eq.s32.totalorder %s76, 0
      %s79 = sadd.s32 %s78, 1
      %s80 = scalar_select %p77, %s78, %s79
      %p83 = pneg %p77
      %p84 = scmp.eq.s32.totalorder %s26, 1
      %p85 = por %p83, %p84
      %p86 = scmp.ne.s32.totalorder %s78, %s81
      %p87 = scmp.eq.s32.totalorder %s26, 0
      %p88 = por %p86, %p87
      %p89 = scmp.ne.s32.totalorder %s78, %s81
      %p90 = scmp.eq.s32.totalorder %s31, 1
      %p91 = por %p89, %p90
      %p92 = scmp.ne.s32.totalorder %s81, %s82
      %p93 = scmp.eq.s32.totalorder %s31, 0
      %p94 = por %p92, %p93
      %p95 = scmp.ne.s32.totalorder %s81, %s82
      %p96 = scmp.eq.s32.totalorder %s32, 1
      %p97 = por %p95, %p96
      %p99 = scmp.ne.s32.totalorder %s82, %s98
      %p100 = scmp.eq.s32.totalorder %s32, 0
      %p101 = por %p99, %p100
      %s103 = sadd.s32 %s102, 1
      %p106 = scmp.eq.s32.totalorder %s26, 1
      %p107 = scmp.ne.s32.totalorder %s102, %s104
      %p108 = scmp.eq.s32.totalorder %s26, 0
      %p109 = por %p107, %p108
      %p110 = scmp.ne.s32.totalorder %s102, %s104
      %p111 = scmp.eq.s32.totalorder %s31, 1
      %p112 = por %p110, %p111
      %p113 = scmp.ne.s32.totalorder %s104, %s105
      %p114 = scmp.eq.s32.totalorder %s31, 0
      %p115 = por %p113, %p114
      %p116 = scmp.ne.s32.totalorder %s104, %s105
      %p117 = scmp.eq.s32.totalorder %s32, 1
      %p118 = por %p116, %p117
      %p120 = scmp.ne.s32.totalorder %s105, %s119
      %p121 = scmp.eq.s32.totalorder %s32, 0
      %p122 = por %p120, %p121
      %s124 = sadd.s32 %s123, 1
      %p127 = scmp.eq.s32.totalorder %s26, 1
      %p128 = scmp.ne.s32.totalorder %s123, %s125
      %p129 = scmp.eq.s32.totalorder %s26, 0
      %p130 = por %p128, %p129
      %p131 = scmp.ne.s32.totalorder %s123, %s125
      %p132 = scmp.eq.s32.totalorder %s31, 1
      %p133 = por %p131, %p132
      %p134 = scmp.ne.s32.totalorder %s125, %s126
      %p135 = scmp.eq.s32.totalorder %s31, 0
      %p136 = por %p134, %p135
      %p137 = scmp.ne.s32.totalorder %s125, %s126
      %p138 = scmp.eq.s32.totalorder %s32, 1
      %p139 = por %p137, %p138
      %p141 = scmp.ne.s32.totalorder %s126, %s140
      %p142 = scmp.eq.s32.totalorder %s32, 0
      %p143 = por %p141, %p142
      %s145 = sadd.s32 %s144, 1
      %p148 = scmp.eq.s32.totalorder %s26, 1
      %p149 = scmp.ne.s32.totalorder %s144, %s146
      %p150 = scmp.eq.s32.totalorder %s26, 0
      %p151 = por %p149, %p150
      %p152 = scmp.ne.s32.totalorder %s144, %s146
      %p153 = scmp.eq.s32.totalorder %s31, 1
      %p154 = por %p152, %p153
      %p155 = scmp.ne.s32.totalorder %s146, %s147
      %p156 = scmp.eq.s32.totalorder %s31, 0
      %p157 = por %p155, %p156
      %p158 = scmp.ne.s32.totalorder %s146, %s147
      %p159 = scmp.eq.s32.totalorder %s32, 1
      %p160 = por %p158, %p159
      %p162 = scmp.ne.s32.totalorder %s147, %s161
      %p163 = scmp.eq.s32.totalorder %s32, 0
      %p164 = por %p162, %p163
      %s166 = sadd.s32 %s165, 1
      %p169 = scmp.eq.s32.totalorder %s26, 1
      %p170 = scmp.ne.s32.totalorder %s165, %s167
      %p171 = scmp.eq.s32.totalorder %s26, 0
      %p172 = por %p170, %p171
      %p173 = scmp.ne.s32.totalorder %s165, %s167
      %p174 = scmp.eq.s32.totalorder %s31, 1
      %p175 = por %p173, %p174
      %p176 = scmp.ne.s32.totalorder %s167, %s168
      %p177 = scmp.eq.s32.totalorder %s31, 0
      %p178 = por %p176, %p177
      %p179 = scmp.ne.s32.totalorder %s167, %s168
      %p180 = scmp.eq.s32.totalorder %s32, 1
      %p181 = por %p179, %p180
      %p183 = scmp.ne.s32.totalorder %s168, %s182
      %p184 = scmp.eq.s32.totalorder %s32, 0
      %p185 = por %p183, %p184
      %s186 = ssub.s32 %s33, %s45
      %p187 = scmp.eq.s32.totalorder %s186, 0
      %s189 = sadd.s32 %s188, 1
      %s190 = scalar_select %p187, %s188, %s189
      %p193 = pneg %p187
      %p194 = scmp.eq.s32.totalorder %s26, 1
      %p195 = por %p193, %p194
      %p196 = scmp.ne.s32.totalorder %s188, %s191
      %p197 = scmp.eq.s32.totalorder %s26, 0
      %p198 = por %p196, %p197
      %p199 = scmp.ne.s32.totalorder %s188, %s191
      %p200 = scmp.eq.s32.totalorder %s31, 1
      %p201 = por %p199, %p200
      %p202 = scmp.ne.s32.totalorder %s191, %s192
      %p203 = scmp.eq.s32.totalorder %s31, 0
      %p204 = por %p202, %p203
      %p205 = scmp.ne.s32.totalorder %s191, %s192
      %p206 = scmp.eq.s32.totalorder %s32, 1
      %p207 = por %p205, %p206
      %p209 = scmp.ne.s32.totalorder %s192, %s208
      %p210 = scmp.eq.s32.totalorder %s32, 0
      %p211 = por %p209, %p210
      %s212 = ssub.s32 %s33, %s45
      %s213 = ssub.s32 %s34, %s41
      %s214 = sor.u32 %s212, %s213
      %p215 = scmp.eq.s32.totalorder %s214, 0
      %s217 = sadd.s32 %s216, 1
      %s218 = scalar_select %p215, %s216, %s217
      %p221 = pneg %p215
      %p222 = scmp.eq.s32.totalorder %s26, 1
      %p223 = por %p221, %p222
      %p224 = scmp.ne.s32.totalorder %s216, %s219
      %p225 = scmp.eq.s32.totalorder %s26, 0
      %p226 = por %p224, %p225
      %p227 = scmp.ne.s32.totalorder %s216, %s219
      %p228 = scmp.eq.s32.totalorder %s31, 1
      %p229 = por %p227, %p228
      %p230 = scmp.ne.s32.totalorder %s219, %s220
      %p231 = scmp.eq.s32.totalorder %s31, 0
      %p232 = por %p230, %p231
      %p233 = scmp.ne.s32.totalorder %s219, %s220
      %p234 = scmp.eq.s32.totalorder %s32, 1
      %p235 = por %p233, %p234
      %p237 = scmp.ne.s32.totalorder %s220, %s236
      %p238 = scmp.eq.s32.totalorder %s32, 0
      %p239 = por %p237, %p238
      %s240 = ssub.s32 %s33, %s45
      %s241 = ssub.s32 %s34, %s41
      %s242 = sor.u32 %s240, %s241
      %p243 = scmp.eq.s32.totalorder %s242, 0
      %s245 = sadd.s32 %s244, 1
      %s246 = scalar_select %p243, %s244, %s245
      %p249 = pneg %p243
      %p250 = scmp.eq.s32.totalorder %s26, 1
      %p251 = por %p249, %p250
      %p252 = scmp.ne.s32.totalorder %s244, %s247
      %p253 = scmp.eq.s32.totalorder %s26, 0
      %p254 = por %p252, %p253
      %p255 = scmp.ne.s32.totalorder %s244, %s247
      %p256 = scmp.eq.s32.totalorder %s31, 1
      %p257 = por %p255, %p256
      %p258 = scmp.ne.s32.totalorder %s247, %s248
      %p259 = scmp.eq.s32.totalorder %s31, 0
      %p260 = por %p258, %p259
      %p261 = scmp.ne.s32.totalorder %s247, %s248
      %p262 = scmp.eq.s32.totalorder %s32, 1
      %p263 = por %p261, %p262
      %p265 = scmp.ne.s32.totalorder %s248, %s264
      %p266 = scmp.eq.s32.totalorder %s32, 0
      %p267 = por %p265, %p266
      %p268 = scmp.le.s32.totalorder 1, %s26
      %p269 = scmp.lt.s32.totalorder %s26, 3
      %p270 = pnand %p268, %p269
      %p271 = pneg %p270
      // Predicated region
      $region9: #{multitask_forward.1} parent=5 // pred_check
        _
      $region10: #{multitask_forward.1} parent=5 // pred_check_branch
        %273 = sbr.rel (%p270) target = $region12
      $region11: #{multitask_forward.1} parent=5 // pred_region
        %s274 = ssub.s32 %s26, 1
        // Predicated region
        $region13: #{multitask_forward.1} parent=11 // pred_check
          %p275 = pneg %p115
        $region14: #{multitask_forward.1} parent=11 // pred_check_branch
          %277 = sbr.rel (%p275) target = $region16
        $region15: #{multitask_forward.1} parent=11 // pred_region
          %s279 = ssub.s32 1024, 1024
          %280 = vsyncadd [#allocation7], %s279
          %s281 = sshll.u32 [#allocation8], 4
          %s282 = int_to_ptr.vmem [resolvable:$true] %s281
          %287 = dma.hbm_to_vmem [thread:$0]  %s2, 1024, %s282, [#allocation7], 128, 128, 8
        $region16: #{multitask_forward.1} parent=11 // pred_fallthru
          _
        // Predicated region
        $region17: #{multitask_forward.1} parent=11 // pred_check
          %p288 = pneg %p136
        $region18: #{multitask_forward.1} parent=11 // pred_check_branch
          %290 = sbr.rel (%p288) target = $region20
        $region19: #{multitask_forward.1} parent=11 // pred_region
          _
        $region20: #{multitask_forward.1} parent=11 // pred_fallthru
          _
        // Predicated region
        $region21: #{multitask_forward.1} parent=11 // pred_check
          %p291 = pneg %p157
        $region22: #{multitask_forward.1} parent=11 // pred_check_branch
          %293 = sbr.rel (%p291) target = $region24
        $region23: #{multitask_forward.1} parent=11 // pred_region
          %s295 = ssub.s32 512, 512
          %296 = vsyncadd [#allocation10], %s295
          %s297 = sshll.u32 [#allocation9], 4
          %s298 = int_to_ptr.vmem [resolvable:$true] %s297
          %303 = dma.hbm_to_vmem [thread:$0]  %s4, 512, %s298, [#allocation10], 128, 128, 8
        $region24: #{multitask_forward.1} parent=11 // pred_fallthru
          _
        // Predicated region
        $region25: #{multitask_forward.1} parent=11 // pred_check
          %p304 = pneg %p178
        $region26: #{multitask_forward.1} parent=11 // pred_check_branch
          %306 = sbr.rel (%p304) target = $region28
        $region27: #{multitask_forward.1} parent=11 // pred_region
          _
        $region28: #{multitask_forward.1} parent=11 // pred_fallthru
          _
      $region12: #{multitask_forward.1} parent=5 // pred_fallthru
        _
      %p307 = scmp.lt.s32.totalorder %s26, 2
      // Predicated region
      $region29: #{multitask_forward.1} parent=5 // pred_check
        %p308 = pneg %p307
      $region30: #{multitask_forward.1} parent=5 // pred_check_branch
        %310 = sbr.rel (%p308) target = $region32
      $region31: #{multitask_forward.1} parent=5 // pred_region
        // Predicated region
        $region33: #{multitask_forward.1} parent=31 // pred_check
          %p311 = pneg %p60
        $region34: #{multitask_forward.1} parent=31 // pred_check_branch
          %313 = sbr.rel (%p311) target = $region36
        $region35: #{multitask_forward.1} parent=31 // pred_region
          %s314 = sand.u32 %s50, 1
          %s315 = scalar_lea.sflag [#allocation4], %s314
          %s316 = sand.u32 %s50, 1
          %s317 = smul.addr %s316, 16
          %s318 = scalar_lea.vmem [#allocation3], %s317
          %s319 = smul.u32 2, %s33
          %s321 = ssub.s32 256, 256
          %322 = vsyncadd %s315, %s321
          %s323 = smul.addr %s319, 2
          %s324 = sadd.s32 %s34, %s323
          %s325 = smul.addr %s324, 128
          %s326 = scalar_lea.hbm %s0, %s325
          %s327 = sshll.u32 %s318, 4
          %s328 = int_to_ptr.vmem [resolvable:$true] %s327
          %333 = dma.hbm_to_vmem [thread:$0]  %s326, 256, %s328, %s315, 256, 128, 8
        $region36: #{multitask_forward.1} parent=31 // pred_fallthru
          _
        // Predicated region
        $region37: #{multitask_forward.1} parent=31 // pred_check
          %p334 = pneg %p88
        $region38: #{multitask_forward.1} parent=31 // pred_check_branch
          %336 = sbr.rel (%p334) target = $region40
        $region39: #{multitask_forward.1} parent=31 // pred_region
          %s337 = sand.u32 %s26, 1
          %s338 = scalar_lea.sflag [#allocation7], %s337
          %s339 = sand.u32 %s78, 1
          %s340 = smul.addr %s339, 16
          %s341 = scalar_lea.vmem [#allocation6], %s340
          %s342 = smul.u32 2, %s33
          %s344 = ssub.s32 256, 256
          %345 = vsyncadd %s338, %s344
          %s346 = smul.addr %s342, 2
          %s347 = sadd.s32 %s34, %s346
          %s348 = smul.addr %s347, 128
          %s349 = scalar_lea.hbm %s1, %s348
          %s350 = sshll.u32 %s341, 4
          %s351 = int_to_ptr.vmem [resolvable:$true] %s350
          %356 = dma.hbm_to_vmem [thread:$0]  %s349, 256, %s351, %s338, 256, 128, 8
        $region40: #{multitask_forward.1} parent=31 // pred_fallthru
          _
      $region32: #{multitask_forward.1} parent=5 // pred_fallthru
        _
      %p357 = scmp.le.s32.totalorder 1, %s26
      %p358 = scmp.lt.s32.totalorder %s26, 3
      %p359 = pnand %p357, %p358
      %p360 = pneg %p359
      // Predicated region
      $region41: #{multitask_forward.1} parent=5 // pred_check
        _
      $region42: #{multitask_forward.1} parent=5 // pred_check_branch
        %362 = sbr.rel (%p359) target = $region44
      $region43: #{multitask_forward.1} parent=5 // pred_region
        %s363 = ssub.s32 %s26, 1
        %s364 = sand.u32 %s53, 1
        %s365 = scalar_lea.sflag [#allocation4], %s364
        %s366 = sand.u32 %s53, 1
        %s367 = smul.addr %s366, 16
        %s368 = scalar_lea.vmem [#allocation3], %s367
        // Predicated region
        $region45: #{multitask_forward.1} parent=43 // pred_check
          %p369 = pneg %p66
        $region46: #{multitask_forward.1} parent=43 // pred_check_branch
          %371 = sbr.rel (%p369) target = $region48
        $region47: #{multitask_forward.1} parent=43 // pred_region
          %372 = dma.done %s365, 256
        $region48: #{multitask_forward.1} parent=43 // pred_fallthru
          _
        %s373 = sand.u32 %s31, 1
        %s374 = scalar_lea.sflag [#allocation7], %s373
        %s375 = sand.u32 %s81, 1
        %s376 = smul.addr %s375, 16
        %s377 = scalar_lea.vmem [#allocation6], %s376
        // Predicated region
        $region49: #{multitask_forward.1} parent=43 // pred_check
          %p378 = pneg %p94
        $region50: #{multitask_forward.1} parent=43 // pred_check_branch
          %380 = sbr.rel (%p378) target = $region52
        $region51: #{multitask_forward.1} parent=43 // pred_region
          %381 = dma.done %s374, 256
        $region52: #{multitask_forward.1} parent=43 // pred_fallthru
          _
        // Predicated region
        $region53: #{multitask_forward.1} parent=43 // pred_check
          %p382 = pneg %p115
        $region54: #{multitask_forward.1} parent=43 // pred_check_branch
          %384 = sbr.rel (%p382) target = $region56
        $region55: #{multitask_forward.1} parent=43 // pred_region
          %385 = dma.done [#allocation7], 1024
        $region56: #{multitask_forward.1} parent=43 // pred_fallthru
          _
        // Predicated region
        $region57: #{multitask_forward.1} parent=43 // pred_check
          %p386 = pneg %p157
        $region58: #{multitask_forward.1} parent=43 // pred_check_branch
          %388 = sbr.rel (%p386) target = $region60
        $region59: #{multitask_forward.1} parent=43 // pred_region
          %389 = dma.done [#allocation10], 512
        $region60: #{multitask_forward.1} parent=43 // pred_fallthru
          _
        %s390 = sand.u32 %s53, 1
        %s391 = scalar_lea.sflag [#allocation4], %s390
        %s392 = sand.u32 %s53, 1
        %s393 = smul.addr %s392, 16
        %s394 = scalar_lea.vmem [#allocation3], %s393
        %p395 = pneg %p66
        %p396 = pneg %p63
        %s397 = sand.u32 %s31, 1
        %s398 = scalar_lea.sflag [#allocation7], %s397
        %s399 = sand.u32 %s81, 1
        %s400 = smul.addr %s399, 16
        %s401 = scalar_lea.vmem [#allocation6], %s400
        %p402 = pneg %p94
        %p403 = pneg %p91
        %p404 = pneg %p115
        %p405 = pneg %p112
        %p406 = pneg %p136
        %p407 = pneg %p133
        %p408 = pneg %p157
        %p409 = pneg %p154
        %p410 = pneg %p178
        %p411 = pneg %p175
        %p412 = pneg %p204
        %p413 = pneg %p201
        %p414 = pneg %p232
        %p415 = pneg %p229
        %s416 = sand.u32 %s31, 1
        %s417 = scalar_lea.sflag [#allocation13], %s416
        %s418 = sand.u32 %s219, 1
        %s419 = smul.addr %s418, 16
        %s420 = scalar_lea.vmem [#allocation12], %s419
        %p421 = pneg %p260
        %p422 = pneg %p257
        %s423 = sand.u32 %s31, 1
        %s424 = scalar_lea.sflag [#allocation13], %s423
        %s425 = sand.u32 %s247, 1
        %s426 = smul.addr %s425, 16
        %s427 = scalar_lea.vmem [#allocation14], %s426
        %s428 = smul.u32 2, %s35
        %s429 = smul.u32 2, %s35
        %s430 = smul.u32 2, %s35
        %s431 = smul.u32 2, %s35
        %v432 = vld [vmem:[%s368] sm:$0xff]
        %v433 = vld [vmem:[%s368 + $0x8] sm:$0xff]
        %v434 = vld [vmem:[%s377] sm:$0xff]
        %v435 = vld [vmem:[%s377 + $0x8] sm:$0xff]
        %vm436 = vcmask 261120
        %437 = vst.msk [vmem:[%s427] sm:$0xff] %vm436, %v432
        %438 = vst.msk [vmem:[%s427 + $0x8] sm:$0xff] %vm436, %v433
        %441 = vrot.lane.b32.xlu0 %v434, 32
        %v442 = vpop.permute.xlu0 %441
        %443 = vrot.lane.b32.xlu0 %v435, 32
        %v444 = vpop.permute.xlu0 %443
        %vm447 = vcmask 523520
        %448 = vst.msk [vmem:[%s427] sm:$0xff] %vm447, %v442
        %449 = vst.msk [vmem:[%s427 + $0x8] sm:$0xff] %vm447, %v444
        %v450 = vld [vmem:[%s427] sm:$0xff]
        %v451 = vld [vmem:[%s427 + $0x8] sm:$0xff]
        %v452 = vld [vmem:[#allocation8] sm:$0xff]
        %v453 = vld [vmem:[#allocation8 + $0x8] sm:$0xff]
        %v454 = vld [vmem:[#allocation8 + $0x10] sm:$0xff]
        %v455 = vld [vmem:[#allocation8 + $0x18] sm:$0xff]
        %v456 = vld [vmem:[#allocation8 + $0x20] sm:$0xff]
        %v457 = vld [vmem:[#allocation8 + $0x28] sm:$0xff]
        %v458 = vld [vmem:[#allocation8 + $0x30] sm:$0xff]
        %v459 = vld [vmem:[#allocation8 + $0x38] sm:$0xff]
        %v460 = vld [vmem:[%s3] sm:$0x1]
        %v462 = vlaneseq
        %v463 = vshrl.u32 %v462, 7
        %v464 = vsub.s32 0, %v463
        %v465 = vrot.slane %v460, %v464
        %vm467 = vcmask 523264
        %v469 = vsel %vm467, %v450, 0
        %v472 = vsel %vm467, %v451, 0
        %474 = vmatprep.subr.mxu0 0.0
        %475 = vmatpush1.msra.mxu0 0.0
        %476 = vmatprep.subr.mxu0 0.0
        %477 = vmatpush1.msra.mxu0 0.0
        %478 = vmatprep.subr.mxu0 0.0
        %479 = vmatpush1.msra.mxu0 0.0
        %480 = vmatprep.subr.mxu0 0.0
        %481 = vmatpush1.msra.mxu0 0.0
        %482 = vmatprep.subr.mxu0 0.0
        %483 = vmatpush1.msra.mxu0 0.0
        %484 = vmatprep.subr.mxu0 0.0
        %485 = vmatpush1.msra.mxu0 0.0
        %486 = vmatprep.subr.mxu0 0.0
        %487 = vmatpush1.msra.mxu0 0.0
        %488 = vmatprep.subr.mxu0 0.0
        %489 = vmatpush1.msra.mxu0 0.0
        %490 = vmatprep.subr.mxu0 0.0
        %491 = vmatpush1.msra.mxu0 %v459
        %492 = vmatprep.subr.mxu0 0.0
        %493 = vmatpush1.msra.mxu0 %v458
        %494 = vmatprep.subr.mxu0 0.0
        %495 = vmatpush1.msra.mxu0 %v457
        %496 = vmatprep.subr.mxu0 0.0
        %497 = vmatpush1.msra.mxu0 %v456
        %498 = vmatprep.subr.mxu0 0.0
        %499 = vmatpush1.msra.mxu0 %v455
        %500 = vmatprep.subr.mxu0 0.0
        %501 = vmatpush1.msra.mxu0 %v454
        %502 = vmatprep.subr.mxu0 0.0
        %503 = vmatpush1.msra.mxu0 %v453
        %504 = vmatprep.subr.mxu0 0.0
        %505 = vmatpush1.msra.mxu0 %v452
        %506 = vmatprep.subr.mxu0 0.0
        %507 = vmatpush2.msra.mxu0 0.0
        %508 = vmatprep.subr.mxu0 0.0
        %509 = vmatpush2.msra.mxu0 0.0
        %510 = vmatprep.subr.mxu0 0.0
        %511 = vmatpush2.msra.mxu0 0.0
        %512 = vmatprep.subr.mxu0 0.0
        %513 = vmatpush2.msra.mxu0 0.0
        %514 = vmatprep.subr.mxu0 0.0
        %515 = vmatpush2.msra.mxu0 0.0
        %516 = vmatprep.subr.mxu0 0.0
        %517 = vmatpush2.msra.mxu0 0.0
        %518 = vmatprep.subr.mxu0 0.0
        %519 = vmatpush2.msra.mxu0 0.0
        %520 = vmatprep.subr.mxu0 0.0
        %521 = vmatpush2.msra.mxu0 0.0
        %522 = vmatprep.subr.mxu0 0.0
        %523 = vmatpush2.msra.mxu0 0.0
        %524 = vmatprep.subr.mxu0 0.0
        %525 = vmatpush2.msra.mxu0 0.0
        %526 = vmatprep.subr.mxu0 0.0
        %527 = vmatpush2.msra.mxu0 0.0
        %528 = vmatprep.subr.mxu0 0.0
        %529 = vmatpush2.msra.mxu0 0.0
        %530 = vmatprep.subr.mxu0 0.0
        %531 = vmatpush2.msra.mxu0 0.0
        %532 = vmatprep.subr.mxu0 0.0
        %533 = vmatpush2.msra.mxu0 0.0
        %534 = vmatprep.subr.mxu0 0.0
        %535 = vmatpush2.msra.mxu0 0.0
        %536 = vmatprep.subr.mxu0 0.0
        %537 = vmatpush2.msra.mxu0 0.0
        %538 = vmatprep.mubr.f32.mxu0 0.0
        %539 = vmatmul.mubr.f32.gmra.mxu0 %v469
        %v540 = vpop.f32.mrf.mxu0
        %v541 = vadd.f32 %v465, %v540
        %v542 = vpop.f32.mrf.mxu0
        %543 = vmatprep.mubr.f32.mxu0 0.0
        %544 = vmatmul.mubr.f32.gmra.mxu0 %v472
        %v545 = vpop.f32.mrf.mxu0
        %v546 = vadd.f32 %v465, %v545
        %v547 = vpop.f32.mrf.mxu0
        %548 = vdwg.mxu0
        %549 = vst [vmem:[%s420] sm:$0xff] %v541
        %550 = vst [vmem:[%s420 + $0x8] sm:$0xff] %v546
        %p551 = scmp.eq.s32.totalorder %s36, 0
        // Predicated region
        $region61: #{multitask_forward.1} parent=43 // pred_check
          %p552 = pneg %p551
        $region62: #{multitask_forward.1} parent=43 // pred_check_branch
          %554 = sbr.rel (%p552) target = $region64
        $region63: #{multitask_forward.1} parent=43 // pred_region
          %vm555 = vcmask 254976
          %556 = vst.msk [vmem:[#allocation2] sm:$0x3] %vm555, -inf
        $region64: #{multitask_forward.1} parent=43 // pred_fallthru
          _
        %v557 = vld [vmem:[#allocation2] sm:$0x3]
        %v558 = vsel %vm436, %v432, -inf
        %v559 = vrot.slane %v558, 4
        %v560 = vmax.f32 %v558, %v559
        %v561 = vrot.slane %v560, 2
        %v562 = vmax.f32 %v560, %v561
        %v563 = vrot.slane %v562, 1
        %v564 = vmax.f32 %v562, %v563
        %v565 = vsel %vm436, %v433, -inf
        %v566 = vrot.slane %v565, 4
        %v567 = vmax.f32 %v565, %v566
        %v568 = vrot.slane %v567, 2
        %v569 = vmax.f32 %v567, %v568
        %v570 = vrot.slane %v569, 1
        %v571 = vmax.f32 %v569, %v570
        %vm574 = vcmask 1041409
        %v575 = vsel %vm574, %v571, %v564
        %v577 = vmax.f32 %v557, %v575
        %vm578 = vcmask 254976
        %579 = vst.msk [vmem:[#allocation2] sm:$0x3] %vm578, %v577
        %p580 = scmp.eq.s32.totalorder %s36, 1
        // Predicated region
        $region65: #{multitask_forward.1} parent=43 // pred_check
          %p581 = pneg %p580
        $region66: #{multitask_forward.1} parent=43 // pred_check_branch
          %583 = sbr.rel (%p581) target = $region68
        $region67: #{multitask_forward.1} parent=43 // pred_region
          %v584 = vld [vmem:[#allocation2] sm:$0x3]
          %v585 = vld [vmem:[#allocation9] sm:$0xff]
          %v586 = vld [vmem:[#allocation9 + $0x8] sm:$0xff]
          %v587 = vld [vmem:[#allocation9 + $0x10] sm:$0xff]
          %v588 = vld [vmem:[#allocation9 + $0x18] sm:$0xff]
          %v589 = vld [vmem:[%s5] sm:$0x1]
          %v591 = vlaneseq
          %v592 = vshrl.u32 %v591, 7
          %v593 = vsub.s32 0, %v592
          %v594 = vrot.slane %v589, %v593
          %v597 = vsel %vm436, %v584, 0
          %599 = vmatprep.subr.mxu0 0.0
          %600 = vmatpush1.msra.mxu0 0.0
          %601 = vmatprep.subr.mxu0 0.0
          %602 = vmatpush1.msra.mxu0 0.0
          %603 = vmatprep.subr.mxu0 0.0
          %604 = vmatpush1.msra.mxu0 0.0
          %605 = vmatprep.subr.mxu0 0.0
          %606 = vmatpush1.msra.mxu0 0.0
          %607 = vmatprep.subr.mxu0 0.0
          %608 = vmatpush1.msra.mxu0 0.0
          %609 = vmatprep.subr.mxu0 0.0
          %610 = vmatpush1.msra.mxu0 0.0
          %611 = vmatprep.subr.mxu0 0.0
          %612 = vmatpush1.msra.mxu0 0.0
          %613 = vmatprep.subr.mxu0 0.0
          %614 = vmatpush1.msra.mxu0 0.0
          %615 = vmatprep.subr.mxu0 0.0
          %616 = vmatpush1.msra.mxu0 0.0
          %617 = vmatprep.subr.mxu0 0.0
          %618 = vmatpush1.msra.mxu0 0.0
          %619 = vmatprep.subr.mxu0 0.0
          %620 = vmatpush1.msra.mxu0 0.0
          %621 = vmatprep.subr.mxu0 0.0
          %622 = vmatpush1.msra.mxu0 0.0
          %623 = vmatprep.subr.mxu0 0.0
          %624 = vmatpush1.msra.mxu0 %v588
          %625 = vmatprep.subr.mxu0 0.0
          %626 = vmatpush1.msra.mxu0 %v587
          %627 = vmatprep.subr.mxu0 0.0
          %628 = vmatpush1.msra.mxu0 %v586
          %629 = vmatprep.subr.mxu0 0.0
          %630 = vmatpush1.msra.mxu0 %v585
          %631 = vmatprep.subr.mxu0 0.0
          %632 = vmatpush2.msra.mxu0 0.0
          %633 = vmatprep.subr.mxu0 0.0
          %634 = vmatpush2.msra.mxu0 0.0
          %635 = vmatprep.subr.mxu0 0.0
          %636 = vmatpush2.msra.mxu0 0.0
          %637 = vmatprep.subr.mxu0 0.0
          %638 = vmatpush2.msra.mxu0 0.0
          %639 = vmatprep.subr.mxu0 0.0
          %640 = vmatpush2.msra.mxu0 0.0
          %641 = vmatprep.subr.mxu0 0.0
          %642 = vmatpush2.msra.mxu0 0.0
          %643 = vmatprep.subr.mxu0 0.0
          %644 = vmatpush2.msra.mxu0 0.0
          %645 = vmatprep.subr.mxu0 0.0
          %646 = vmatpush2.msra.mxu0 0.0
          %647 = vmatprep.subr.mxu0 0.0
          %648 = vmatpush2.msra.mxu0 0.0
          %649 = vmatprep.subr.mxu0 0.0
          %650 = vmatpush2.msra.mxu0 0.0
          %651 = vmatprep.subr.mxu0 0.0
          %652 = vmatpush2.msra.mxu0 0.0
          %653 = vmatprep.subr.mxu0 0.0
          %654 = vmatpush2.msra.mxu0 0.0
          %655 = vmatprep.subr.mxu0 0.0
          %656 = vmatpush2.msra.mxu0 0.0
          %657 = vmatprep.subr.mxu0 0.0
          %658 = vmatpush2.msra.mxu0 0.0
          %659 = vmatprep.subr.mxu0 0.0
          %660 = vmatpush2.msra.mxu0 0.0
          %661 = vmatprep.subr.mxu0 0.0
          %662 = vmatpush2.msra.mxu0 0.0
          %663 = vmatprep.mubr.f32.mxu0 0.0
          %664 = vmatmul.mubr.f32.gmra.mxu0 %v597
          %v665 = vpop.f32.mrf.mxu0
          %v666 = vadd.f32 %v594, %v665
          %v667 = vpop.f32.mrf.mxu0
          %668 = vdwg.mxu0
          %669 = vst [vmem:[#allocation11] sm:$0x3] %v666
        $region68: #{multitask_forward.1} parent=43 // pred_fallthru
          _
        %s670 = sand.u32 %s31, 1
        %s671 = scalar_lea.sflag [#allocation13], %s670
        %s672 = sand.u32 %s219, 1
        %s673 = smul.addr %s672, 16
        %s674 = scalar_lea.vmem [#allocation12], %s673
        %s675 = sand.u32 %s31, 1
        %s676 = scalar_lea.sflag [#allocation13], %s675
        %s677 = sand.u32 %s247, 1
        %s678 = smul.addr %s677, 16
        %s679 = scalar_lea.vmem [#allocation14], %s678
        // Predicated region
        $region69: #{multitask_forward.1} parent=43 // pred_check
          %p680 = pneg %p201
        $region70: #{multitask_forward.1} parent=43 // pred_check_branch
          %682 = sbr.rel (%p680) target = $region72
        $region71: #{multitask_forward.1} parent=43 // pred_region
          %s684 = ssub.s32 32, 32
          %685 = vsyncadd [#allocation5], %s684
          %s686 = smul.addr %s35, 32
          %s687 = scalar_lea.hbm %s6, %s686
          %s689 = sshll.u32 [#allocation11], 4
          %s690 = int_to_ptr.vmem [resolvable:$true] %s689
          %692 = dma.vmem_to_hbm [thread:$0]  %s690, 32, %s687, [#allocation5]
        $region72: #{multitask_forward.1} parent=43 // pred_fallthru
          _
        // Predicated region
        $region73: #{multitask_forward.1} parent=43 // pred_check
          %p693 = pneg %p229
        $region74: #{multitask_forward.1} parent=43 // pred_check_branch
          %695 = sbr.rel (%p693) target = $region76
        $region75: #{multitask_forward.1} parent=43 // pred_region
          %s696 = smul.u32 2, %s35
          %s698 = ssub.s32 256, 256
          %699 = vsyncadd %s671, %s698
          %s700 = smul.addr %s696, 2
          %s701 = sadd.s32 %s36, %s700
          %s702 = smul.addr %s701, 128
          %s703 = scalar_lea.hbm %s7, %s702
          %s704 = sshll.u32 %s674, 4
          %s705 = int_to_ptr.vmem [resolvable:$true] %s704
          %710 = dma.vmem_to_hbm [thread:$0]  %s705, 256, %s703, %s671, 128, 256, 8
        $region76: #{multitask_forward.1} parent=43 // pred_fallthru
          _
        // Predicated region
        $region77: #{multitask_forward.1} parent=43 // pred_check
          %p711 = pneg %p257
        $region78: #{multitask_forward.1} parent=43 // pred_check_branch
          %713 = sbr.rel (%p711) target = $region80
        $region79: #{multitask_forward.1} parent=43 // pred_region
          %s714 = smul.u32 2, %s35
          %s716 = ssub.s32 256, 256
          %717 = vsyncadd %s676, %s716
          %s718 = smul.addr %s714, 2
          %s719 = sadd.s32 %s36, %s718
          %s720 = smul.addr %s719, 128
          %s721 = scalar_lea.hbm %s8, %s720
          %s722 = sshll.u32 %s679, 4
          %s723 = int_to_ptr.vmem [resolvable:$true] %s722
          %728 = dma.vmem_to_hbm [thread:$0]  %s723, 256, %s721, %s676, 128, 256, 8
        $region80: #{multitask_forward.1} parent=43 // pred_fallthru
          _
        // Predicated region
        $region81: #{multitask_forward.1} parent=43 // pred_check
          %p729 = pneg %p201
        $region82: #{multitask_forward.1} parent=43 // pred_check_branch
          %731 = sbr.rel (%p729) target = $region84
        $region83: #{multitask_forward.1} parent=43 // pred_region
          %732 = dma.done [#allocation5], 32
        $region84: #{multitask_forward.1} parent=43 // pred_fallthru
          _
      $region44: #{multitask_forward.1} parent=5 // pred_fallthru
        _
      %p733 = scmp.le.s32.totalorder 2, %s26
      // Predicated region
      $region85: #{multitask_forward.1} parent=5 // pred_check
        %p734 = pneg %p733
      $region86: #{multitask_forward.1} parent=5 // pred_check_branch
        %736 = sbr.rel (%p734) target = $region88
      $region87: #{multitask_forward.1} parent=5 // pred_region
        %s737 = ssub.s32 %s26, 2
        // Predicated region
        $region89: #{multitask_forward.1} parent=87 // pred_check
          %p738 = pneg %p235
        $region90: #{multitask_forward.1} parent=87 // pred_check_branch
          %740 = sbr.rel (%p738) target = $region92
        $region91: #{multitask_forward.1} parent=87 // pred_region
          %s741 = sand.u32 %s32, 1
          %s742 = scalar_lea.sflag [#allocation13], %s741
          %s743 = sand.u32 %s220, 1
          %s744 = smul.addr %s743, 16
          %s745 = scalar_lea.vmem [#allocation12], %s744
          %746 = dma.done %s742, 256
        $region92: #{multitask_forward.1} parent=87 // pred_fallthru
          _
        // Predicated region
        $region93: #{multitask_forward.1} parent=87 // pred_check
          %p747 = pneg %p263
        $region94: #{multitask_forward.1} parent=87 // pred_check_branch
          %749 = sbr.rel (%p747) target = $region96
        $region95: #{multitask_forward.1} parent=87 // pred_region
          %s750 = sand.u32 %s32, 1
          %s751 = scalar_lea.sflag [#allocation13], %s750
          %s752 = sand.u32 %s248, 1
          %s753 = smul.addr %s752, 16
          %s754 = scalar_lea.vmem [#allocation14], %s753
          %755 = dma.done %s751, 256
        $region96: #{multitask_forward.1} parent=87 // pred_fallthru
          _
      $region88: #{multitask_forward.1} parent=5 // pred_fallthru
        _
    $region6: #{multitask_forward.1} parent=1 // loop_footer
      %s30 = sadd.s32 1, %s26
    $region7: #{multitask_forward.1} parent=1 // loop_footer_branch
      %25 = sbr.rel target = $region3
    $region8: #{multitask_forward.1} parent=1 // loop_exit
      _
    %756 = vsyncpa [#allocation4], 1
    %s757 = scalar_lea.sflag [#allocation4], 1
    %758 = vsyncpa %s757, 1
    %759 = vsyncpa [#allocation7], 1
    %s760 = scalar_lea.sflag [#allocation7], 1
    %761 = vsyncpa %s760, 1
    %762 = vsyncpa [#allocation10], 1
    %763 = vsyncpa [#allocation5], 1
    %s764 = scalar_lea.sflag [#allocation5], 1
    %765 = vsyncpa %s764, 1
    %766 = vsyncpa [#allocation13], 1
    %s767 = scalar_lea.sflag [#allocation13], 1
    %768 = vsyncpa %s767, 1

</llo_original>
